<compile_context>
chip_gen: v7x
topology: tpu7x:2x2x1
jax: 0.10.0
libtpu: 0.0.40
codegen_flags: <defaults>
</compile_context>

<pallas_src>
import functools
import jax
import jax.numpy as jnp
from jax import lax
from jax.experimental import pallas as pl
from jax.experimental.pallas import tpu as pltpu

BN_EPS = 1e-5


# ------------------------------- Pallas kernel ------------------------------ #

def _fused_block_kernel(use_res, has_sel, W, *refs):
    """Whole InvertedResidual block for one image.

    Layout: channels in sublanes, flattened spatial (P = H*W) in lanes.
      x_ref   : (1, Cin, P)   input (NCHW, spatial flattened)
      w1t_ref : (Cexp, Cin)   expand weights, BN1 scale folded
      b1_ref  : (Cexp, 1)     BN1 bias
      wd_ref  : (Cexp, 9)     depthwise 3x3 weights (k = kh*3 + kw), BN2 scale folded
      b2_ref  : (Cexp, 1)     BN2 bias
      w3t_ref : (Cout, Cexp)  project weights, BN3 scale folded
      b3_ref  : (Cout, 1)     BN3 bias
      ml_ref  : (1, P)        1.0 where pixel is NOT in the leftmost column
      mr_ref  : (1, P)        1.0 where pixel is NOT in the rightmost column
      sel_ref : (P, Pout)     stride-2 subsampling selection matrix (only if has_sel)
      o_ref   : (1, Cout, Pout)
    """
    if has_sel:
        (x_ref, w1t_ref, b1_ref, wd_ref, b2_ref, w3t_ref, b3_ref,
         ml_ref, mr_ref, sel_ref, o_ref) = refs
    else:
        (x_ref, w1t_ref, b1_ref, wd_ref, b2_ref, w3t_ref, b3_ref,
         ml_ref, mr_ref, o_ref) = refs
        sel_ref = None

    x = x_ref[0].astype(jnp.float32)                  # (Cin, P)
    cin = x.shape[0]
    P = x.shape[1]
    w1t = w1t_ref[...]                                # (Cexp, Cin)
    cexp = w1t.shape[0]

    # ---- 1x1 expand + BN bias + ReLU : Cin broadcast-FMAs on the VPU -------
    h = jnp.zeros((cexp, P), jnp.float32)
    for ci in range(cin):
        h = h + w1t[:, ci:ci + 1] * x[ci:ci + 1, :]
    h = jnp.maximum(h + b1_ref[...], 0.0)             # (Cexp, P)

    # ---- 3x3 depthwise (computed at stride 1) + BN bias + ReLU -------------
    # Flattened-spatial taps: output pixel o reads input o + (kh-1)*W + (kw-1).
    # Zero concat of W+1 elements at each end supplies the top/bottom padding
    # rows; left/right column wrap-around is zeroed by the column masks.
    pad = jnp.zeros((cexp, W + 1), jnp.float32)
    hp = jnp.concatenate([pad, h, pad], axis=1)       # (Cexp, P + 2W + 2)
    ml = ml_ref[...]                                  # (1, P)
    mr = mr_ref[...]                                  # (1, P)
    wd = wd_ref[...]                                  # (Cexp, 9)
    acc = jnp.zeros((cexp, P), jnp.float32)
    for kh in range(3):
        for kw in range(3):
            off = (W + 1) + (kh - 1) * W + (kw - 1)
            tap = hp[:, off:off + P]
            if kw == 0:
                tap = tap * ml
            elif kw == 2:
                tap = tap * mr
            k = kh * 3 + kw
            acc = acc + tap * wd[:, k:k + 1]
    h2 = jnp.maximum(acc + b2_ref[...], 0.0)          # (Cexp, P)

    # ---- 1x1 project + BN bias (+ residual) on the MXU ---------------------
    y = jnp.dot(w3t_ref[...], h2, preferred_element_type=jnp.float32)
    y = y + b3_ref[...]                               # (Cout, P)
    if use_res:
        y = y + x                                     # stride==1, Cin == Cout
    if sel_ref is not None:
        # stride-2: pick the even-row/even-col pixels in VMEM; only the
        # subsampled result hits HBM.
        y = jnp.dot(y, sel_ref[...], preferred_element_type=jnp.float32)
    o_ref[0] = y.astype(o_ref.dtype)


# ------------------------------- module wrapper ----------------------------- #

def bn_fold(gamma, beta, mean, var):
    scale = gamma / jnp.sqrt(var + BN_EPS)
    bias = beta - mean * scale
    return scale, bias


def init_params(key, inp, oup, expand_ratio=6):
    cexp = inp * expand_ratio
    ks = jax.random.split(key, 12)
    p = {
        # 1x1 expand conv, stored (Cin, Cexp)
        "w1": jax.random.normal(ks[0], (inp, cexp), jnp.float32) * 0.1,
        # depthwise 3x3, stored (3, 3, Cexp)
        "wd": jax.random.normal(ks[1], (3, 3, cexp), jnp.float32) * 0.1,
        # 1x1 project conv, stored (Cexp, oup)
        "w3": jax.random.normal(ks[2], (cexp, oup), jnp.float32) * 0.1,
    }

    def bn(k, c):
        k1, k2, k3, k4 = jax.random.split(k, 4)
        return dict(
            gamma=1.0 + 0.1 * jax.random.normal(k1, (c,), jnp.float32),
            beta=0.1 * jax.random.normal(k2, (c,), jnp.float32),
            mean=0.1 * jax.random.normal(k3, (c,), jnp.float32),
            var=jnp.abs(jax.random.normal(k4, (c,), jnp.float32)) + 0.5,
        )

    p["bn1"] = bn(ks[3], cexp)
    p["bn2"] = bn(ks[4], cexp)
    p["bn3"] = bn(ks[5], oup)
    return p


def inverted_residual(x_nchw, params, stride, use_res_connect):
    """Forward pass.  x_nchw: (N, Cin, H, W) float32.  Returns NCHW."""
    N, Cin, H, W = x_nchw.shape
    assert stride in (1, 2)
    cexp = params["w1"].shape[1]
    oup = params["w3"].shape[1]
    if use_res_connect:
        assert stride == 1 and oup == Cin, \
            "residual connection requires stride == 1 and inp == oup"

    s1, b1 = bn_fold(**params["bn1"])
    s2, b2 = bn_fold(**params["bn2"])
    s3, b3 = bn_fold(**params["bn3"])

    # Fold BN scales into the conv weights once; only biases stay in-kernel.
    w1t = (params["w1"] * s1[None, :]).T.astype(jnp.float32)              # (Cexp, Cin)
    wd2 = (params["wd"] * s2[None, None, :]).reshape(9, cexp).T           # (Cexp, 9)
    w3t = (params["w3"] * s3[None, :]).T.astype(jnp.float32)              # (oup, Cexp)
    b1c = b1.reshape(cexp, 1).astype(jnp.float32)
    b2c = b2.reshape(cexp, 1).astype(jnp.float32)
    b3c = b3.reshape(oup, 1).astype(jnp.float32)

    P = H * W
    Ho = (H + 2 - 3) // stride + 1
    Wo = (W + 2 - 3) // stride + 1
    Pout = Ho * Wo
    x3 = x_nchw.reshape(N, Cin, P)        # free reshape: NCHW, spatial flattened

    # Width-boundary masks for the depthwise taps (1.0 = tap valid).
    colv = jnp.arange(P, dtype=jnp.int32) % W
    mask_l = (colv >= 1).astype(jnp.float32).reshape(1, P)
    mask_r = (colv <= W - 2).astype(jnp.float32).reshape(1, P)

    args = [x3, w1t, b1c, wd2, b2c, w3t, b3c, mask_l, mask_r]
    in_specs = [
        pl.BlockSpec((1, Cin, P), lambda n: (n, 0, 0)),
        pl.BlockSpec((cexp, Cin), lambda n: (0, 0)),
        pl.BlockSpec((cexp, 1), lambda n: (0, 0)),
        pl.BlockSpec((cexp, 9), lambda n: (0, 0)),
        pl.BlockSpec((cexp, 1), lambda n: (0, 0)),
        pl.BlockSpec((oup, cexp), lambda n: (0, 0)),
        pl.BlockSpec((oup, 1), lambda n: (0, 0)),
        pl.BlockSpec((1, P), lambda n: (0, 0)),
        pl.BlockSpec((1, P), lambda n: (0, 0)),
    ]
    has_sel = (stride == 2)
    if has_sel:
        # Selection matrix picking the stride-2 output pixels from the flat
        # stride-1 grid (applied in VMEM, on the MXU).
        centers = (2 * jnp.arange(Ho)[:, None] * W
                   + 2 * jnp.arange(Wo)[None, :]).reshape(-1)             # (Pout,)
        sel = (jnp.arange(P)[:, None] == centers[None, :]).astype(jnp.float32)
        args.append(sel)
        in_specs.append(pl.BlockSpec((P, Pout), lambda n: (0, 0)))

    out = pl.pallas_call(
        functools.partial(_fused_block_kernel, use_res_connect, has_sel, W),
        out_shape=jax.ShapeDtypeStruct((N, oup, Pout), jnp.float32),
        grid=(N,),
        in_specs=in_specs,
        out_specs=pl.BlockSpec((1, oup, Pout), lambda n: (n, 0, 0)),
        compiler_params=pltpu.CompilerParams(
            dimension_semantics=("parallel",)),
    )(*args)
    # TODO(synk): for large feature maps, tile the grid over spatial row blocks
    # (with a 1-row halo) instead of one whole image per grid step.
    return out.reshape(N, oup, Ho, Wo)


# ------------------------------ pure-JAX reference -------------------------- #

def _reference(x_nchw, params, stride, use_res_connect):
    x = jnp.transpose(x_nchw, (0, 2, 3, 1))
    cexp = params["w1"].shape[1]
    s1, b1 = bn_fold(**params["bn1"])
    s2, b2 = bn_fold(**params["bn2"])
    s3, b3 = bn_fold(**params["bn3"])
    dn = ("NHWC", "HWIO", "NHWC")

    h = lax.conv_general_dilated(x, params["w1"].reshape(1, 1, -1, cexp),
                                 (1, 1), "VALID", dimension_numbers=dn)
    h = jnp.maximum(h * s1 + b1, 0.0)
    h = lax.conv_general_dilated(h, params["wd"].reshape(3, 3, 1, cexp),
                                 (stride, stride), ((1, 1), (1, 1)),
                                 dimension_numbers=dn,
                                 feature_group_count=cexp)
    h = jnp.maximum(h * s2 + b2, 0.0)
    h = lax.conv_general_dilated(h, params["w3"].reshape(1, 1, cexp, -1),
                                 (1, 1), "VALID", dimension_numbers=dn)
    h = h * s3 + b3
    if use_res_connect:
        h = h + x
    return jnp.transpose(h, (0, 3, 1, 2))


# ------------------------------------ main ---------------------------------- #

if __name__ == "__main__":
    key = jax.random.PRNGKey(0)
    kx, kp1, kp2 = jax.random.split(key, 3)

    # Config 1: stride=1, residual connection (inp == oup)
    inp, oup, stride = 4, 4, 1
    x = jax.random.normal(kx, (2, inp, 16, 16), jnp.float32)
    params = init_params(kp1, inp, oup)
    y = inverted_residual(x, params, stride, use_res_connect=True)
    jax.block_until_ready(y)
    y_ref = _reference(x, params, stride, use_res_connect=True)
    assert y.shape == (2, oup, 16, 16)
    assert float(jnp.max(jnp.abs(y - y_ref))) < 2e-4

    # Config 2: stride=2, no residual
    inp2, oup2, stride2 = 4, 8, 2
    params2 = init_params(kp2, inp2, oup2)
    y2 = inverted_residual(x, params2, stride2, use_res_connect=False)
    jax.block_until_ready(y2)
    y2_ref = _reference(x, params2, stride2, use_res_connect=False)
    assert y2.shape == (2, oup2, 8, 8)
    assert float(jnp.max(jnp.abs(y2 - y2_ref))) < 2e-4

    print("KERNEL_OK")
</pallas_src>

<mosaic_0001>
module attributes {stable_mosaic.version = 11 : i64} {
  func.func @_fused_block_kernel(%arg0: i32, %arg1: memref<1x4x256xf32, #tpu.memory_space<vmem>>, %arg2: memref<24x4xf32, #tpu.memory_space<vmem>>, %arg3: memref<24x1xf32, #tpu.memory_space<vmem>>, %arg4: memref<24x9xf32, #tpu.memory_space<vmem>>, %arg5: memref<24x1xf32, #tpu.memory_space<vmem>>, %arg6: memref<4x24xf32, #tpu.memory_space<vmem>>, %arg7: memref<4x1xf32, #tpu.memory_space<vmem>>, %arg8: memref<1x256xf32, #tpu.memory_space<vmem>>, %arg9: memref<1x256xf32, #tpu.memory_space<vmem>>, %arg10: memref<1x4x256xf32, #tpu.memory_space<vmem>>) attributes {dimension_semantics = [#tpu.dimension_semantics<parallel>], iteration_bounds = array<i64: 2>, scalar_prefetch = 0 : i64, scratch_operands = 0 : i64, tpu.core_type = #tpu.core_type<tc>, window_params = [{transform_indices = @transform_0, window_bounds = array<i64: 1, 4, 256>}, {pipeline_mode = #tpu.pipeline_mode<synchronous>, transform_indices = @transform_1, window_bounds = array<i64: 24, 4>}, {pipeline_mode = #tpu.pipeline_mode<synchronous>, transform_indices = @transform_2, window_bounds = array<i64: 24, 1>}, {pipeline_mode = #tpu.pipeline_mode<synchronous>, transform_indices = @transform_3, window_bounds = array<i64: 24, 9>}, {pipeline_mode = #tpu.pipeline_mode<synchronous>, transform_indices = @transform_4, window_bounds = array<i64: 24, 1>}, {pipeline_mode = #tpu.pipeline_mode<synchronous>, transform_indices = @transform_5, window_bounds = array<i64: 4, 24>}, {pipeline_mode = #tpu.pipeline_mode<synchronous>, transform_indices = @transform_6, window_bounds = array<i64: 4, 1>}, {pipeline_mode = #tpu.pipeline_mode<synchronous>, transform_indices = @transform_7, window_bounds = array<i64: 1, 256>}, {pipeline_mode = #tpu.pipeline_mode<synchronous>, transform_indices = @transform_8, window_bounds = array<i64: 1, 256>}, {transform_indices = @transform_9, window_bounds = array<i64: 1, 4, 256>}]} {
    %c0 = arith.constant 0 : index
    %c0_0 = arith.constant 0 : index
    %c0_1 = arith.constant 0 : index
    %0 = vector.load %arg1[%c0, %c0_0, %c0_1] : memref<1x4x256xf32, #tpu.memory_space<vmem>>, vector<1x4x256xf32>
    %1 = vector.shape_cast %0 : vector<1x4x256xf32> to vector<4x256xf32>
    %c0_2 = arith.constant 0 : index
    %c0_3 = arith.constant 0 : index
    %2 = vector.load %arg2[%c0_2, %c0_3] : memref<24x4xf32, #tpu.memory_space<vmem>>, vector<24x4xf32>
    %cst = arith.constant 0.000000e+00 : f32
    %3 = vector.broadcast %cst : f32 to vector<24x256xf32>
    %4 = vector.extract_strided_slice %2 {offsets = [0, 0], sizes = [24, 1], strides = [1, 1]} : vector<24x4xf32> to vector<24x1xf32>
    %5 = vector.extract_strided_slice %1 {offsets = [0, 0], sizes = [1, 256], strides = [1, 1]} : vector<4x256xf32> to vector<1x256xf32>
    %6 = vector.broadcast %4 : vector<24x1xf32> to vector<24x256xf32>
    %7 = vector.broadcast %5 : vector<1x256xf32> to vector<24x256xf32>
    %8 = arith.mulf %6, %7 : vector<24x256xf32>
    %9 = arith.addf %3, %8 : vector<24x256xf32>
    %10 = vector.extract_strided_slice %2 {offsets = [0, 1], sizes = [24, 1], strides = [1, 1]} : vector<24x4xf32> to vector<24x1xf32>
    %11 = vector.extract_strided_slice %1 {offsets = [1, 0], sizes = [1, 256], strides = [1, 1]} : vector<4x256xf32> to vector<1x256xf32>
    %12 = vector.broadcast %10 : vector<24x1xf32> to vector<24x256xf32>
    %13 = vector.broadcast %11 : vector<1x256xf32> to vector<24x256xf32>
    %14 = arith.mulf %12, %13 : vector<24x256xf32>
    %15 = arith.addf %9, %14 : vector<24x256xf32>
    %16 = vector.extract_strided_slice %2 {offsets = [0, 2], sizes = [24, 1], strides = [1, 1]} : vector<24x4xf32> to vector<24x1xf32>
    %17 = vector.extract_strided_slice %1 {offsets = [2, 0], sizes = [1, 256], strides = [1, 1]} : vector<4x256xf32> to vector<1x256xf32>
    %18 = vector.broadcast %16 : vector<24x1xf32> to vector<24x256xf32>
    %19 = vector.broadcast %17 : vector<1x256xf32> to vector<24x256xf32>
    %20 = arith.mulf %18, %19 : vector<24x256xf32>
    %21 = arith.addf %15, %20 : vector<24x256xf32>
    %22 = vector.extract_strided_slice %2 {offsets = [0, 3], sizes = [24, 1], strides = [1, 1]} : vector<24x4xf32> to vector<24x1xf32>
    %23 = vector.extract_strided_slice %1 {offsets = [3, 0], sizes = [1, 256], strides = [1, 1]} : vector<4x256xf32> to vector<1x256xf32>
    %24 = vector.broadcast %22 : vector<24x1xf32> to vector<24x256xf32>
    %25 = vector.broadcast %23 : vector<1x256xf32> to vector<24x256xf32>
    %26 = arith.mulf %24, %25 : vector<24x256xf32>
    %27 = arith.addf %21, %26 : vector<24x256xf32>
    %c0_4 = arith.constant 0 : index
    %c0_5 = arith.constant 0 : index
    %28 = vector.load %arg3[%c0_4, %c0_5] : memref<24x1xf32, #tpu.memory_space<vmem>>, vector<24x1xf32>
    %29 = vector.broadcast %28 : vector<24x1xf32> to vector<24x256xf32>
    %30 = arith.addf %27, %29 : vector<24x256xf32>
    %cst_6 = arith.constant 0.000000e+00 : f32
    %31 = vector.broadcast %cst_6 : f32 to vector<24x256xf32>
    %32 = arith.maximumf %30, %31 : vector<24x256xf32>
    %cst_7 = arith.constant 0.000000e+00 : f32
    %33 = vector.broadcast %cst_7 : f32 to vector<24x17xf32>
    %34 = tpu.concatenate %33, %32, %33 in 1 : vector<24x17xf32>, vector<24x256xf32>, vector<24x17xf32> -> vector<24x290xf32>
    %c0_8 = arith.constant 0 : index
    %c0_9 = arith.constant 0 : index
    %35 = vector.load %arg8[%c0_8, %c0_9] : memref<1x256xf32, #tpu.memory_space<vmem>>, vector<1x256xf32>
    %c0_10 = arith.constant 0 : index
    %c0_11 = arith.constant 0 : index
    %36 = vector.load %arg9[%c0_10, %c0_11] : memref<1x256xf32, #tpu.memory_space<vmem>>, vector<1x256xf32>
    %c0_12 = arith.constant 0 : index
    %c0_13 = arith.constant 0 : index
    %37 = vector.load %arg4[%c0_12, %c0_13] : memref<24x9xf32, #tpu.memory_space<vmem>>, vector<24x9xf32>
    %cst_14 = arith.constant 0.000000e+00 : f32
    %38 = vector.broadcast %cst_14 : f32 to vector<24x256xf32>
    %39 = vector.extract_strided_slice %34 {offsets = [0, 0], sizes = [24, 256], strides = [1, 1]} : vector<24x290xf32> to vector<24x256xf32>
    %40 = vector.broadcast %35 : vector<1x256xf32> to vector<24x256xf32>
    %41 = arith.mulf %39, %40 : vector<24x256xf32>
    %42 = vector.extract_strided_slice %37 {offsets = [0, 0], sizes = [24, 1], strides = [1, 1]} : vector<24x9xf32> to vector<24x1xf32>
    %43 = vector.broadcast %42 : vector<24x1xf32> to vector<24x256xf32>
    %44 = arith.mulf %41, %43 : vector<24x256xf32>
    %45 = arith.addf %38, %44 : vector<24x256xf32>
    %46 = vector.extract_strided_slice %34 {offsets = [0, 1], sizes = [24, 256], strides = [1, 1]} : vector<24x290xf32> to vector<24x256xf32>
    %47 = vector.extract_strided_slice %37 {offsets = [0, 1], sizes = [24, 1], strides = [1, 1]} : vector<24x9xf32> to vector<24x1xf32>
    %48 = vector.broadcast %47 : vector<24x1xf32> to vector<24x256xf32>
    %49 = arith.mulf %46, %48 : vector<24x256xf32>
    %50 = arith.addf %45, %49 : vector<24x256xf32>
    %51 = vector.extract_strided_slice %34 {offsets = [0, 2], sizes = [24, 256], strides = [1, 1]} : vector<24x290xf32> to vector<24x256xf32>
    %52 = vector.broadcast %36 : vector<1x256xf32> to vector<24x256xf32>
    %53 = arith.mulf %51, %52 : vector<24x256xf32>
    %54 = vector.extract_strided_slice %37 {offsets = [0, 2], sizes = [24, 1], strides = [1, 1]} : vector<24x9xf32> to vector<24x1xf32>
    %55 = vector.broadcast %54 : vector<24x1xf32> to vector<24x256xf32>
    %56 = arith.mulf %53, %55 : vector<24x256xf32>
    %57 = arith.addf %50, %56 : vector<24x256xf32>
    %58 = vector.extract_strided_slice %34 {offsets = [0, 16], sizes = [24, 256], strides = [1, 1]} : vector<24x290xf32> to vector<24x256xf32>
    %59 = vector.broadcast %35 : vector<1x256xf32> to vector<24x256xf32>
    %60 = arith.mulf %58, %59 : vector<24x256xf32>
    %61 = vector.extract_strided_slice %37 {offsets = [0, 3], sizes = [24, 1], strides = [1, 1]} : vector<24x9xf32> to vector<24x1xf32>
    %62 = vector.broadcast %61 : vector<24x1xf32> to vector<24x256xf32>
    %63 = arith.mulf %60, %62 : vector<24x256xf32>
    %64 = arith.addf %57, %63 : vector<24x256xf32>
    %65 = vector.extract_strided_slice %34 {offsets = [0, 17], sizes = [24, 256], strides = [1, 1]} : vector<24x290xf32> to vector<24x256xf32>
    %66 = vector.extract_strided_slice %37 {offsets = [0, 4], sizes = [24, 1], strides = [1, 1]} : vector<24x9xf32> to vector<24x1xf32>
    %67 = vector.broadcast %66 : vector<24x1xf32> to vector<24x256xf32>
    %68 = arith.mulf %65, %67 : vector<24x256xf32>
    %69 = arith.addf %64, %68 : vector<24x256xf32>
    %70 = vector.extract_strided_slice %34 {offsets = [0, 18], sizes = [24, 256], strides = [1, 1]} : vector<24x290xf32> to vector<24x256xf32>
    %71 = vector.broadcast %36 : vector<1x256xf32> to vector<24x256xf32>
    %72 = arith.mulf %70, %71 : vector<24x256xf32>
    %73 = vector.extract_strided_slice %37 {offsets = [0, 5], sizes = [24, 1], strides = [1, 1]} : vector<24x9xf32> to vector<24x1xf32>
    %74 = vector.broadcast %73 : vector<24x1xf32> to vector<24x256xf32>
    %75 = arith.mulf %72, %74 : vector<24x256xf32>
    %76 = arith.addf %69, %75 : vector<24x256xf32>
    %77 = vector.extract_strided_slice %34 {offsets = [0, 32], sizes = [24, 256], strides = [1, 1]} : vector<24x290xf32> to vector<24x256xf32>
    %78 = vector.broadcast %35 : vector<1x256xf32> to vector<24x256xf32>
    %79 = arith.mulf %77, %78 : vector<24x256xf32>
    %80 = vector.extract_strided_slice %37 {offsets = [0, 6], sizes = [24, 1], strides = [1, 1]} : vector<24x9xf32> to vector<24x1xf32>
    %81 = vector.broadcast %80 : vector<24x1xf32> to vector<24x256xf32>
    %82 = arith.mulf %79, %81 : vector<24x256xf32>
    %83 = arith.addf %76, %82 : vector<24x256xf32>
    %84 = vector.extract_strided_slice %34 {offsets = [0, 33], sizes = [24, 256], strides = [1, 1]} : vector<24x290xf32> to vector<24x256xf32>
    %85 = vector.extract_strided_slice %37 {offsets = [0, 7], sizes = [24, 1], strides = [1, 1]} : vector<24x9xf32> to vector<24x1xf32>
    %86 = vector.broadcast %85 : vector<24x1xf32> to vector<24x256xf32>
    %87 = arith.mulf %84, %86 : vector<24x256xf32>
    %88 = arith.addf %83, %87 : vector<24x256xf32>
    %89 = vector.extract_strided_slice %34 {offsets = [0, 34], sizes = [24, 256], strides = [1, 1]} : vector<24x290xf32> to vector<24x256xf32>
    %90 = vector.broadcast %36 : vector<1x256xf32> to vector<24x256xf32>
    %91 = arith.mulf %89, %90 : vector<24x256xf32>
    %92 = vector.extract_strided_slice %37 {offsets = [0, 8], sizes = [24, 1], strides = [1, 1]} : vector<24x9xf32> to vector<24x1xf32>
    %93 = vector.broadcast %92 : vector<24x1xf32> to vector<24x256xf32>
    %94 = arith.mulf %91, %93 : vector<24x256xf32>
    %95 = arith.addf %88, %94 : vector<24x256xf32>
    %c0_15 = arith.constant 0 : index
    %c0_16 = arith.constant 0 : index
    %96 = vector.load %arg5[%c0_15, %c0_16] : memref<24x1xf32, #tpu.memory_space<vmem>>, vector<24x1xf32>
    %97 = vector.broadcast %96 : vector<24x1xf32> to vector<24x256xf32>
    %98 = arith.addf %95, %97 : vector<24x256xf32>
    %cst_17 = arith.constant 0.000000e+00 : f32
    %99 = vector.broadcast %cst_17 : f32 to vector<24x256xf32>
    %100 = arith.maximumf %98, %99 : vector<24x256xf32>
    %c0_18 = arith.constant 0 : index
    %c0_19 = arith.constant 0 : index
    %101 = vector.load %arg6[%c0_18, %c0_19] : memref<4x24xf32, #tpu.memory_space<vmem>>, vector<4x24xf32>
    %cst_20 = arith.constant dense<0.000000e+00> : vector<4x256xf32>
    %102 = tpu.matmul %101, %100, %cst_20 {dimension_numbers = #tpu.dot_dimension_numbers<[1], [0], [0], [1], [0, 0, 1, 1], [], []>} : vector<4x24xf32>, vector<24x256xf32>, vector<4x256xf32> -> vector<4x256xf32>
    %c0_21 = arith.constant 0 : index
    %c0_22 = arith.constant 0 : index
    %103 = vector.load %arg7[%c0_21, %c0_22] : memref<4x1xf32, #tpu.memory_space<vmem>>, vector<4x1xf32>
    %104 = vector.broadcast %103 : vector<4x1xf32> to vector<4x256xf32>
    %105 = arith.addf %102, %104 : vector<4x256xf32>
    %106 = arith.addf %105, %1 : vector<4x256xf32>
    %c0_23 = arith.constant 0 : index
    %c0_24 = arith.constant 0 : index
    %c0_25 = arith.constant 0 : index
    %107 = vector.load %arg10[%c0_23, %c0_24, %c0_25] : memref<1x4x256xf32, #tpu.memory_space<vmem>>, vector<1x4x256xf32>
    %108 = vector.shape_cast %107 : vector<1x4x256xf32> to vector<4x256xf32>
    %109 = vector.shape_cast %106 : vector<4x256xf32> to vector<1x4x256xf32>
    tpu.vector_store %arg10[%c0_23, %c0_24, %c0_25], %109 {strides = array<i32>} : memref<1x4x256xf32, #tpu.memory_space<vmem>>, vector<1x4x256xf32>,
    return
  }
  func.func @transform_0(%arg0: i32) -> (i32, i32, i32) {
    %c0_i32 = arith.constant 0 : i32
    %c0_i32_0 = arith.constant 0 : i32
    %c0_i32_1 = arith.constant 0 : i32
    return %arg0, %c0_i32, %c0_i32_0 : i32, i32, i32
  }
  func.func @transform_1(%arg0: i32) -> (i32, i32) {
    %c0_i32 = arith.constant 0 : i32
    %c0_i32_0 = arith.constant 0 : i32
    %c0_i32_1 = arith.constant 0 : i32
    return %c0_i32, %c0_i32_0 : i32, i32
  }
  func.func @transform_2(%arg0: i32) -> (i32, i32) {
    %c0_i32 = arith.constant 0 : i32
    %c0_i32_0 = arith.constant 0 : i32
    %c0_i32_1 = arith.constant 0 : i32
    return %c0_i32, %c0_i32_0 : i32, i32
  }
  func.func @transform_3(%arg0: i32) -> (i32, i32) {
    %c0_i32 = arith.constant 0 : i32
    %c0_i32_0 = arith.constant 0 : i32
    %c0_i32_1 = arith.constant 0 : i32
    return %c0_i32, %c0_i32_0 : i32, i32
  }
  func.func @transform_4(%arg0: i32) -> (i32, i32) {
    %c0_i32 = arith.constant 0 : i32
    %c0_i32_0 = arith.constant 0 : i32
    %c0_i32_1 = arith.constant 0 : i32
    return %c0_i32, %c0_i32_0 : i32, i32
  }
  func.func @transform_5(%arg0: i32) -> (i32, i32) {
    %c0_i32 = arith.constant 0 : i32
    %c0_i32_0 = arith.constant 0 : i32
    %c0_i32_1 = arith.constant 0 : i32
    return %c0_i32, %c0_i32_0 : i32, i32
  }
  func.func @transform_6(%arg0: i32) -> (i32, i32) {
    %c0_i32 = arith.constant 0 : i32
    %c0_i32_0 = arith.constant 0 : i32
    %c0_i32_1 = arith.constant 0 : i32
    return %c0_i32, %c0_i32_0 : i32, i32
  }
  func.func @transform_7(%arg0: i32) -> (i32, i32) {
    %c0_i32 = arith.constant 0 : i32
    %c0_i32_0 = arith.constant 0 : i32
    %c0_i32_1 = arith.constant 0 : i32
    return %c0_i32, %c0_i32_0 : i32, i32
  }
  func.func @transform_8(%arg0: i32) -> (i32, i32) {
    %c0_i32 = arith.constant 0 : i32
    %c0_i32_0 = arith.constant 0 : i32
    %c0_i32_1 = arith.constant 0 : i32
    return %c0_i32, %c0_i32_0 : i32, i32
  }
  func.func @transform_9(%arg0: i32) -> (i32, i32, i32) {
    %c0_i32 = arith.constant 0 : i32
    %c0_i32_0 = arith.constant 0 : i32
    %c0_i32_1 = arith.constant 0 : i32
    return %arg0, %c0_i32, %c0_i32_0 : i32, i32, i32
  }
}

</mosaic_0001>

<llo_original>
// kernel: tpu_custom_call.1
$region0: #{tpu_custom_call.1}
  #allocation0 [shape = 'u32[]', space=smem, size = 0x4, offset = 0x4, fixed_abs, tag = 'smem constant byte address 0x4 - core index']
  #allocation1 [shape = 'u32[144,128]{1,0:T(1,128)}', space=vmem, size = 0x12000, scoped, tag = 'internal scratch']
  %s0 = inlined_call_operand.vmem [shape: f32[2,4,256], index: 0, kind: input, shape index: {}]
  %s1 = inlined_call_operand.vmem [shape: f32[24,4], index: 1, kind: input, shape index: {}]
  %s2 = inlined_call_operand.vmem [shape: f32[24,1], index: 2, kind: input, shape index: {}]
  %s3 = inlined_call_operand.vmem [shape: f32[24,9], index: 3, kind: input, shape index: {}]
  %s4 = inlined_call_operand.vmem [shape: f32[24,1], index: 4, kind: input, shape index: {}]
  %s5 = inlined_call_operand.vmem [shape: f32[4,24], index: 5, kind: input, shape index: {}]
  %s6 = inlined_call_operand.vmem [shape: f32[4,1], index: 6, kind: input, shape index: {}]
  %s7 = inlined_call_operand.vmem [shape: f32[1,256], index: 7, kind: input, shape index: {}]
  %s8 = inlined_call_operand.vmem [shape: f32[1,256], index: 8, kind: input, shape index: {}]
  %s9 = inlined_call_operand.hbm [shape: f32[2,4,256], index: 9, kind: output, shape index: {}]
  %s10 = sld [smem:[#allocation0]]
  $region69: #{tpu_custom_call.1} parent=0
    _
  %s12 = ssub.s32 1, %s10
  %s13 = scalar_select 0, %s12, %s10
  $region1: #{tpu_custom_call.1} parent=0
    #allocation2 [shape = 'u8[8192]{0}', space=vmem, size = 0x2000, scoped, tag = 'output window, operand 0']
    #allocation3 [shape = 's32[2]{0}', space=sflag, size = 0x8, scoped, tag = 'scoped memory for tpu_custom_call.1']
    %14 = vsyncpa [#allocation3], 0
    %s15 = scalar_lea.sflag [#allocation3], 1
    %16 = vsyncpa %s15, 0
    loop: start=0, step=1, limit=4
    $region2: #{tpu_custom_call.1} parent=1 // loop_pre_header
      _
    $region3: #{tpu_custom_call.1} parent=1 // loop_header
      %s18 = sphi 0, %s22
      %p19 = scmp.ge.s32.totalorder %s18, 4
      %s28 = sphi 0, %s30
      %s31 = sphi 0, %s28
      %s32 = sphi 0, %s31
      %s48 = sphi 0, %s32
      %s52 = sphi 0, %s52
      %s54 = sphi 0, %s52
      %s55 = sphi 0, %s54
      %s69 = sphi 0, %s55
      %s73 = sphi 0, %s73
      %s75 = sphi 0, %s73
      %s76 = sphi 0, %s75
      %s90 = sphi 0, %s76
      %s94 = sphi 0, %s94
      %s96 = sphi 0, %s94
      %s97 = sphi 0, %s96
      %s111 = sphi 0, %s97
      %s115 = sphi 0, %s115
      %s117 = sphi 0, %s115
      %s118 = sphi 0, %s117
      %s132 = sphi 0, %s118
      %s136 = sphi 0, %s136
      %s138 = sphi 0, %s136
      %s139 = sphi 0, %s138
      %s153 = sphi 0, %s139
      %s157 = sphi 0, %s157
      %s159 = sphi 0, %s157
      %s160 = sphi 0, %s159
      %s174 = sphi 0, %s160
      %s178 = sphi 0, %s178
      %s180 = sphi 0, %s178
      %s181 = sphi 0, %s180
      %s195 = sphi 0, %s181
      %s199 = sphi 0, %s199
      %s201 = sphi 0, %s199
      %s202 = sphi 0, %s201
      %s216 = sphi 0, %s202
      %s222 = sphi 0, %s224
      %s225 = sphi 0, %s222
      %s226 = sphi 0, %s225
      %s242 = sphi 0, %s226
    $region4: #{tpu_custom_call.1} parent=1 // loop_header_branch
      %21 = sbr.rel (%p19) target = $region8
    $region5: #{tpu_custom_call.1} parent=1 // loop_body
      %s23 = ssub.s32 %s18, 1
      %s24 = ssub.s32 %s18, 2
      %s25 = sadd.s32 %s18, 1
      %s26 = ssub.s32 %s18, %s25
      %p27 = scmp.eq.s32.totalorder %s26, 0
      %s29 = sadd.s32 %s28, 1
      %s30 = scalar_select %p27, %s28, %s29
      %p33 = pneg %p27
      %p34 = scmp.eq.s32.totalorder %s18, 1
      %p35 = por %p33, %p34
      %p36 = scmp.ne.s32.totalorder %s28, %s31
      %p37 = scmp.eq.s32.totalorder %s18, 0
      %p38 = por %p36, %p37
      %p39 = scmp.ne.s32.totalorder %s28, %s31
      %p40 = scmp.eq.s32.totalorder %s23, 1
      %p41 = por %p39, %p40
      %p42 = scmp.ne.s32.totalorder %s31, %s32
      %p43 = scmp.eq.s32.totalorder %s23, 0
      %p44 = por %p42, %p43
      %p45 = scmp.ne.s32.totalorder %s31, %s32
      %p46 = scmp.eq.s32.totalorder %s24, 1
      %p47 = por %p45, %p46
      %p49 = scmp.ne.s32.totalorder %s32, %s48
      %p50 = scmp.eq.s32.totalorder %s24, 0
      %p51 = por %p49, %p50
      %s53 = sadd.s32 %s52, 1
      %p56 = scmp.eq.s32.totalorder %s18, 1
      %p57 = scmp.ne.s32.totalorder %s52, %s54
      %p58 = scmp.eq.s32.totalorder %s18, 0
      %p59 = por %p57, %p58
      %p60 = scmp.ne.s32.totalorder %s52, %s54
      %p61 = scmp.eq.s32.totalorder %s23, 1
      %p62 = por %p60, %p61
      %p63 = scmp.ne.s32.totalorder %s54, %s55
      %p64 = scmp.eq.s32.totalorder %s23, 0
      %p65 = por %p63, %p64
      %p66 = scmp.ne.s32.totalorder %s54, %s55
      %p67 = scmp.eq.s32.totalorder %s24, 1
      %p68 = por %p66, %p67
      %p70 = scmp.ne.s32.totalorder %s55, %s69
      %p71 = scmp.eq.s32.totalorder %s24, 0
      %p72 = por %p70, %p71
      %s74 = sadd.s32 %s73, 1
      %p77 = scmp.eq.s32.totalorder %s18, 1
      %p78 = scmp.ne.s32.totalorder %s73, %s75
      %p79 = scmp.eq.s32.totalorder %s18, 0
      %p80 = por %p78, %p79
      %p81 = scmp.ne.s32.totalorder %s73, %s75
      %p82 = scmp.eq.s32.totalorder %s23, 1
      %p83 = por %p81, %p82
      %p84 = scmp.ne.s32.totalorder %s75, %s76
      %p85 = scmp.eq.s32.totalorder %s23, 0
      %p86 = por %p84, %p85
      %p87 = scmp.ne.s32.totalorder %s75, %s76
      %p88 = scmp.eq.s32.totalorder %s24, 1
      %p89 = por %p87, %p88
      %p91 = scmp.ne.s32.totalorder %s76, %s90
      %p92 = scmp.eq.s32.totalorder %s24, 0
      %p93 = por %p91, %p92
      %s95 = sadd.s32 %s94, 1
      %p98 = scmp.eq.s32.totalorder %s18, 1
      %p99 = scmp.ne.s32.totalorder %s94, %s96
      %p100 = scmp.eq.s32.totalorder %s18, 0
      %p101 = por %p99, %p100
      %p102 = scmp.ne.s32.totalorder %s94, %s96
      %p103 = scmp.eq.s32.totalorder %s23, 1
      %p104 = por %p102, %p103
      %p105 = scmp.ne.s32.totalorder %s96, %s97
      %p106 = scmp.eq.s32.totalorder %s23, 0
      %p107 = por %p105, %p106
      %p108 = scmp.ne.s32.totalorder %s96, %s97
      %p109 = scmp.eq.s32.totalorder %s24, 1
      %p110 = por %p108, %p109
      %p112 = scmp.ne.s32.totalorder %s97, %s111
      %p113 = scmp.eq.s32.totalorder %s24, 0
      %p114 = por %p112, %p113
      %s116 = sadd.s32 %s115, 1
      %p119 = scmp.eq.s32.totalorder %s18, 1
      %p120 = scmp.ne.s32.totalorder %s115, %s117
      %p121 = scmp.eq.s32.totalorder %s18, 0
      %p122 = por %p120, %p121
      %p123 = scmp.ne.s32.totalorder %s115, %s117
      %p124 = scmp.eq.s32.totalorder %s23, 1
      %p125 = por %p123, %p124
      %p126 = scmp.ne.s32.totalorder %s117, %s118
      %p127 = scmp.eq.s32.totalorder %s23, 0
      %p128 = por %p126, %p127
      %p129 = scmp.ne.s32.totalorder %s117, %s118
      %p130 = scmp.eq.s32.totalorder %s24, 1
      %p131 = por %p129, %p130
      %p133 = scmp.ne.s32.totalorder %s118, %s132
      %p134 = scmp.eq.s32.totalorder %s24, 0
      %p135 = por %p133, %p134
      %s137 = sadd.s32 %s136, 1
      %p140 = scmp.eq.s32.totalorder %s18, 1
      %p141 = scmp.ne.s32.totalorder %s136, %s138
      %p142 = scmp.eq.s32.totalorder %s18, 0
      %p143 = por %p141, %p142
      %p144 = scmp.ne.s32.totalorder %s136, %s138
      %p145 = scmp.eq.s32.totalorder %s23, 1
      %p146 = por %p144, %p145
      %p147 = scmp.ne.s32.totalorder %s138, %s139
      %p148 = scmp.eq.s32.totalorder %s23, 0
      %p149 = por %p147, %p148
      %p150 = scmp.ne.s32.totalorder %s138, %s139
      %p151 = scmp.eq.s32.totalorder %s24, 1
      %p152 = por %p150, %p151
      %p154 = scmp.ne.s32.totalorder %s139, %s153
      %p155 = scmp.eq.s32.totalorder %s24, 0
      %p156 = por %p154, %p155
      %s158 = sadd.s32 %s157, 1
      %p161 = scmp.eq.s32.totalorder %s18, 1
      %p162 = scmp.ne.s32.totalorder %s157, %s159
      %p163 = scmp.eq.s32.totalorder %s18, 0
      %p164 = por %p162, %p163
      %p165 = scmp.ne.s32.totalorder %s157, %s159
      %p166 = scmp.eq.s32.totalorder %s23, 1
      %p167 = por %p165, %p166
      %p168 = scmp.ne.s32.totalorder %s159, %s160
      %p169 = scmp.eq.s32.totalorder %s23, 0
      %p170 = por %p168, %p169
      %p171 = scmp.ne.s32.totalorder %s159, %s160
      %p172 = scmp.eq.s32.totalorder %s24, 1
      %p173 = por %p171, %p172
      %p175 = scmp.ne.s32.totalorder %s160, %s174
      %p176 = scmp.eq.s32.totalorder %s24, 0
      %p177 = por %p175, %p176
      %s179 = sadd.s32 %s178, 1
      %p182 = scmp.eq.s32.totalorder %s18, 1
      %p183 = scmp.ne.s32.totalorder %s178, %s180
      %p184 = scmp.eq.s32.totalorder %s18, 0
      %p185 = por %p183, %p184
      %p186 = scmp.ne.s32.totalorder %s178, %s180
      %p187 = scmp.eq.s32.totalorder %s23, 1
      %p188 = por %p186, %p187
      %p189 = scmp.ne.s32.totalorder %s180, %s181
      %p190 = scmp.eq.s32.totalorder %s23, 0
      %p191 = por %p189, %p190
      %p192 = scmp.ne.s32.totalorder %s180, %s181
      %p193 = scmp.eq.s32.totalorder %s24, 1
      %p194 = por %p192, %p193
      %p196 = scmp.ne.s32.totalorder %s181, %s195
      %p197 = scmp.eq.s32.totalorder %s24, 0
      %p198 = por %p196, %p197
      %s200 = sadd.s32 %s199, 1
      %p203 = scmp.eq.s32.totalorder %s18, 1
      %p204 = scmp.ne.s32.totalorder %s199, %s201
      %p205 = scmp.eq.s32.totalorder %s18, 0
      %p206 = por %p204, %p205
      %p207 = scmp.ne.s32.totalorder %s199, %s201
      %p208 = scmp.eq.s32.totalorder %s23, 1
      %p209 = por %p207, %p208
      %p210 = scmp.ne.s32.totalorder %s201, %s202
      %p211 = scmp.eq.s32.totalorder %s23, 0
      %p212 = por %p210, %p211
      %p213 = scmp.ne.s32.totalorder %s201, %s202
      %p214 = scmp.eq.s32.totalorder %s24, 1
      %p215 = por %p213, %p214
      %p217 = scmp.ne.s32.totalorder %s202, %s216
      %p218 = scmp.eq.s32.totalorder %s24, 0
      %p219 = por %p217, %p218
      %s220 = ssub.s32 %s18, %s25
      %p221 = scmp.eq.s32.totalorder %s220, 0
      %s223 = sadd.s32 %s222, 1
      %s224 = scalar_select %p221, %s222, %s223
      %p227 = pneg %p221
      %p228 = scmp.eq.s32.totalorder %s18, 1
      %p229 = por %p227, %p228
      %p230 = scmp.ne.s32.totalorder %s222, %s225
      %p231 = scmp.eq.s32.totalorder %s18, 0
      %p232 = por %p230, %p231
      %p233 = scmp.ne.s32.totalorder %s222, %s225
      %p234 = scmp.eq.s32.totalorder %s23, 1
      %p235 = por %p233, %p234
      %p236 = scmp.ne.s32.totalorder %s225, %s226
      %p237 = scmp.eq.s32.totalorder %s23, 0
      %p238 = por %p236, %p237
      %p239 = scmp.ne.s32.totalorder %s225, %s226
      %p240 = scmp.eq.s32.totalorder %s24, 1
      %p241 = por %p239, %p240
      %p243 = scmp.ne.s32.totalorder %s226, %s242
      %p244 = scmp.eq.s32.totalorder %s24, 0
      %p245 = por %p243, %p244
      %p246 = scmp.le.s32.totalorder 1, %s18
      %p247 = scmp.lt.s32.totalorder %s18, 3
      %p248 = pnand %p246, %p247
      %p249 = pneg %p248
      // Predicated region
      $region9: #{tpu_custom_call.1} parent=5 // pred_check
        _
      $region10: #{tpu_custom_call.1} parent=5 // pred_check_branch
        %251 = sbr.rel (%p248) target = $region12
      $region11: #{tpu_custom_call.1} parent=5 // pred_region
        %s252 = ssub.s32 %s18, 1
        // Predicated region
        $region13: #{tpu_custom_call.1} parent=11 // pred_check
          %p253 = pneg %p65
        $region14: #{tpu_custom_call.1} parent=11 // pred_check_branch
          %255 = sbr.rel (%p253) target = $region16
        $region15: #{tpu_custom_call.1} parent=11 // pred_region
          _
        $region16: #{tpu_custom_call.1} parent=11 // pred_fallthru
          _
        // Predicated region
        $region17: #{tpu_custom_call.1} parent=11 // pred_check
          %p256 = pneg %p86
        $region18: #{tpu_custom_call.1} parent=11 // pred_check_branch
          %258 = sbr.rel (%p256) target = $region20
        $region19: #{tpu_custom_call.1} parent=11 // pred_region
          _
        $region20: #{tpu_custom_call.1} parent=11 // pred_fallthru
          _
        // Predicated region
        $region21: #{tpu_custom_call.1} parent=11 // pred_check
          %p259 = pneg %p107
        $region22: #{tpu_custom_call.1} parent=11 // pred_check_branch
          %261 = sbr.rel (%p259) target = $region24
        $region23: #{tpu_custom_call.1} parent=11 // pred_region
          _
        $region24: #{tpu_custom_call.1} parent=11 // pred_fallthru
          _
        // Predicated region
        $region25: #{tpu_custom_call.1} parent=11 // pred_check
          %p262 = pneg %p128
        $region26: #{tpu_custom_call.1} parent=11 // pred_check_branch
          %264 = sbr.rel (%p262) target = $region28
        $region27: #{tpu_custom_call.1} parent=11 // pred_region
          _
        $region28: #{tpu_custom_call.1} parent=11 // pred_fallthru
          _
        // Predicated region
        $region29: #{tpu_custom_call.1} parent=11 // pred_check
          %p265 = pneg %p149
        $region30: #{tpu_custom_call.1} parent=11 // pred_check_branch
          %267 = sbr.rel (%p265) target = $region32
        $region31: #{tpu_custom_call.1} parent=11 // pred_region
          _
        $region32: #{tpu_custom_call.1} parent=11 // pred_fallthru
          _
        // Predicated region
        $region33: #{tpu_custom_call.1} parent=11 // pred_check
          %p268 = pneg %p170
        $region34: #{tpu_custom_call.1} parent=11 // pred_check_branch
          %270 = sbr.rel (%p268) target = $region36
        $region35: #{tpu_custom_call.1} parent=11 // pred_region
          _
        $region36: #{tpu_custom_call.1} parent=11 // pred_fallthru
          _
        // Predicated region
        $region37: #{tpu_custom_call.1} parent=11 // pred_check
          %p271 = pneg %p191
        $region38: #{tpu_custom_call.1} parent=11 // pred_check_branch
          %273 = sbr.rel (%p271) target = $region40
        $region39: #{tpu_custom_call.1} parent=11 // pred_region
          _
        $region40: #{tpu_custom_call.1} parent=11 // pred_fallthru
          _
        // Predicated region
        $region41: #{tpu_custom_call.1} parent=11 // pred_check
          %p274 = pneg %p212
        $region42: #{tpu_custom_call.1} parent=11 // pred_check_branch
          %276 = sbr.rel (%p274) target = $region44
        $region43: #{tpu_custom_call.1} parent=11 // pred_region
          _
        $region44: #{tpu_custom_call.1} parent=11 // pred_fallthru
          _
      $region12: #{tpu_custom_call.1} parent=5 // pred_fallthru
        _
      %p277 = scmp.lt.s32.totalorder %s18, 2
      // Predicated region
      $region45: #{tpu_custom_call.1} parent=5 // pred_check
        %p278 = pneg %p277
      $region46: #{tpu_custom_call.1} parent=5 // pred_check_branch
        %280 = sbr.rel (%p278) target = $region48
      $region47: #{tpu_custom_call.1} parent=5 // pred_region
        // Predicated region
        $region49: #{tpu_custom_call.1} parent=47 // pred_check
          %p281 = pneg %p38
        $region50: #{tpu_custom_call.1} parent=47 // pred_check_branch
          %283 = sbr.rel (%p281) target = $region52
        $region51: #{tpu_custom_call.1} parent=47 // pred_region
          %p284 = scmp.lt.s32.totalorder %s18, 1
          %s285 = scalar_select %p284, %s18, 1
          %s286 = smul.addr %s285, 2
          %s287 = smul.addr %s286, 4
          %s288 = scalar_lea.vmem %s0, %s287
        $region52: #{tpu_custom_call.1} parent=47 // pred_fallthru
          _
      $region48: #{tpu_custom_call.1} parent=5 // pred_fallthru
        _
      %p289 = scmp.le.s32.totalorder 1, %s18
      %p290 = scmp.lt.s32.totalorder %s18, 3
      %p291 = pnand %p289, %p290
      %p292 = pneg %p291
      // Predicated region
      $region53: #{tpu_custom_call.1} parent=5 // pred_check
        _
      $region54: #{tpu_custom_call.1} parent=5 // pred_check_branch
        %294 = sbr.rel (%p291) target = $region56
      $region55: #{tpu_custom_call.1} parent=5 // pred_region
        %s295 = ssub.s32 %s18, 1
        %p296 = scmp.lt.s32.totalorder %s23, 1
        %s297 = scalar_select %p296, %s23, 1
        %s298 = smul.addr %s297, 2
        %s299 = smul.addr %s298, 4
        %s300 = scalar_lea.vmem %s0, %s299
        %p301 = pneg %p44
        %p302 = pneg %p41
        %p303 = pneg %p65
        %p304 = pneg %p62
        %p305 = pneg %p86
        %p306 = pneg %p83
        %p307 = pneg %p107
        %p308 = pneg %p104
        %p309 = pneg %p128
        %p310 = pneg %p125
        %p311 = pneg %p149
        %p312 = pneg %p146
        %p313 = pneg %p170
        %p314 = pneg %p167
        %p315 = pneg %p191
        %p316 = pneg %p188
        %p317 = pneg %p212
        %p318 = pneg %p209
        %p319 = pneg %p238
        %p320 = pneg %p235
        %s321 = sand.u32 %s225, 1
        %s322 = scalar_lea.sflag [#allocation3], %s321
        %s323 = sand.u32 %s225, 1
        %s324 = smul.addr %s323, 8
        %s325 = scalar_lea.vmem [#allocation2], %s324
        %p326 = scmp.lt.s32.totalorder %s23, 1
        %s327 = scalar_select %p326, %s23, 1
        %s328 = smul.addr %s327, 2
        %s329 = smul.addr %s328, 4
        %s330 = scalar_lea.vmem %s0, %s329
        %v331 = vld [vmem:[%s330] sm:$0xff]
        %v332 = vld [vmem:[%s1] sm:$0xff]
        %v333 = vld [vmem:[%s1 + $0x8] sm:$0xff]
        %v334 = vld [vmem:[%s1 + $0x10] sm:$0xff]
        %336 = vset.pattern.permute.xlu0 0
        %337 = vperm.xlu0 %336, %v332
        %v338 = vpop.permute.xlu0 %337
        %341 = vset.pattern.permute.xlu0 0
        %342 = vperm.xlu0 %341, %v333
        %v343 = vpop.permute.xlu0 %342
        %346 = vset.pattern.permute.xlu0 0
        %347 = vperm.xlu0 %346, %v334
        %v348 = vpop.permute.xlu0 %347
        %v351 = vlaneseq
        %v352 = vshrl.u32 %v351, 7
        %v353 = vsub.s32 0, %v352
        %v354 = vrot.slane %v331, %v353
        %v355 = vlaneseq
        %v356 = vshrl.u32 %v355, 7
        %v357 = vsub.s32 4, %v356
        %v358 = vrot.slane %v331, %v357
        %v361 = vlaneseq
        %v362 = vshrl.u32 %v361, 7
        %v363 = vsub.s32 0, %v362
        %v364 = vrot.slane %v354, %v363
        %v365 = vlaneseq
        %v366 = vshrl.u32 %v365, 7
        %v367 = vsub.s32 0, %v366
        %v368 = vrot.slane %v358, %v367
        %v369 = vmul.f32 %v338, %v364
        %v370 = vmul.f32 %v338, %v368
        %v371 = vmul.f32 %v343, %v364
        %v372 = vmul.f32 %v343, %v368
        %v373 = vmul.f32 %v348, %v364
        %v374 = vmul.f32 %v348, %v368
        %v375 = vadd.f32 %v369, 0.0
        %v376 = vadd.f32 %v370, 0.0
        %v377 = vadd.f32 %v371, 0.0
        %v378 = vadd.f32 %v372, 0.0
        %v379 = vadd.f32 %v373, 0.0
        %v380 = vadd.f32 %v374, 0.0
        %381 = vset.pattern.permute.xlu0 1
        %382 = vperm.xlu0 %381, %v332
        %v383 = vpop.permute.xlu0 %382
        %385 = vset.pattern.permute.xlu0 1
        %386 = vperm.xlu0 %385, %v333
        %v387 = vpop.permute.xlu0 %386
        %389 = vset.pattern.permute.xlu0 1
        %390 = vperm.xlu0 %389, %v334
        %v391 = vpop.permute.xlu0 %390
        %v393 = vlaneseq
        %v394 = vshrl.u32 %v393, 7
        %v395 = vsub.s32 1, %v394
        %v396 = vrot.slane %v331, %v395
        %v397 = vlaneseq
        %v398 = vshrl.u32 %v397, 7
        %v399 = vsub.s32 5, %v398
        %v400 = vrot.slane %v331, %v399
        %v403 = vlaneseq
        %v404 = vshrl.u32 %v403, 7
        %v405 = vsub.s32 1, %v404
        %v406 = vrot.slane %v396, %v405
        %v407 = vlaneseq
        %v408 = vshrl.u32 %v407, 7
        %v409 = vsub.s32 1, %v408
        %v410 = vrot.slane %v400, %v409
        %v411 = vmul.f32 %v383, %v406
        %v412 = vmul.f32 %v383, %v410
        %v413 = vmul.f32 %v387, %v406
        %v414 = vmul.f32 %v387, %v410
        %v415 = vmul.f32 %v391, %v406
        %v416 = vmul.f32 %v391, %v410
        %v417 = vadd.f32 %v375, %v411
        %v418 = vadd.f32 %v376, %v412
        %v419 = vadd.f32 %v377, %v413
        %v420 = vadd.f32 %v378, %v414
        %v421 = vadd.f32 %v379, %v415
        %v422 = vadd.f32 %v380, %v416
        %423 = vset.pattern.permute.xlu0 2
        %424 = vperm.xlu0 %423, %v332
        %v425 = vpop.permute.xlu0 %424
        %427 = vset.pattern.permute.xlu0 2
        %428 = vperm.xlu0 %427, %v333
        %v429 = vpop.permute.xlu0 %428
        %431 = vset.pattern.permute.xlu0 2
        %432 = vperm.xlu0 %431, %v334
        %v433 = vpop.permute.xlu0 %432
        %v435 = vlaneseq
        %v436 = vshrl.u32 %v435, 7
        %v437 = vsub.s32 2, %v436
        %v438 = vrot.slane %v331, %v437
        %v439 = vlaneseq
        %v440 = vshrl.u32 %v439, 7
        %v441 = vsub.s32 6, %v440
        %v442 = vrot.slane %v331, %v441
        %v445 = vlaneseq
        %v446 = vshrl.u32 %v445, 7
        %v447 = vsub.s32 2, %v446
        %v448 = vrot.slane %v438, %v447
        %v449 = vlaneseq
        %v450 = vshrl.u32 %v449, 7
        %v451 = vsub.s32 2, %v450
        %v452 = vrot.slane %v442, %v451
        %v453 = vmul.f32 %v425, %v448
        %v454 = vmul.f32 %v425, %v452
        %v455 = vmul.f32 %v429, %v448
        %v456 = vmul.f32 %v429, %v452
        %v457 = vmul.f32 %v433, %v448
        %v458 = vmul.f32 %v433, %v452
        %v459 = vadd.f32 %v417, %v453
        %v460 = vadd.f32 %v418, %v454
        %v461 = vadd.f32 %v419, %v455
        %v462 = vadd.f32 %v420, %v456
        %v463 = vadd.f32 %v421, %v457
        %v464 = vadd.f32 %v422, %v458
        %465 = vset.pattern.permute.xlu0 3
        %466 = vperm.xlu0 %465, %v332
        %v467 = vpop.permute.xlu0 %466
        %469 = vset.pattern.permute.xlu0 3
        %470 = vperm.xlu0 %469, %v333
        %v471 = vpop.permute.xlu0 %470
        %473 = vset.pattern.permute.xlu0 3
        %474 = vperm.xlu0 %473, %v334
        %v475 = vpop.permute.xlu0 %474
        %v477 = vlaneseq
        %v478 = vshrl.u32 %v477, 7
        %v479 = vsub.s32 3, %v478
        %v480 = vrot.slane %v331, %v479
        %v481 = vlaneseq
        %v482 = vshrl.u32 %v481, 7
        %v483 = vsub.s32 7, %v482
        %v484 = vrot.slane %v331, %v483
        %v487 = vlaneseq
        %v488 = vshrl.u32 %v487, 7
        %v489 = vsub.s32 3, %v488
        %v490 = vrot.slane %v480, %v489
        %v491 = vlaneseq
        %v492 = vshrl.u32 %v491, 7
        %v493 = vsub.s32 3, %v492
        %v494 = vrot.slane %v484, %v493
        %v495 = vmul.f32 %v467, %v490
        %v496 = vmul.f32 %v467, %v494
        %v497 = vmul.f32 %v471, %v490
        %v498 = vmul.f32 %v471, %v494
        %v499 = vmul.f32 %v475, %v490
        %v500 = vmul.f32 %v475, %v494
        %v501 = vadd.f32 %v459, %v495
        %v502 = vadd.f32 %v460, %v496
        %v503 = vadd.f32 %v461, %v497
        %v504 = vadd.f32 %v462, %v498
        %v505 = vadd.f32 %v463, %v499
        %v506 = vadd.f32 %v464, %v500
        %v507 = vld [vmem:[%s2] sm:$0xff]
        %v508 = vld [vmem:[%s2 + $0x8] sm:$0xff]
        %v509 = vld [vmem:[%s2 + $0x10] sm:$0xff]
        %511 = vset.pattern.permute.xlu0 0
        %512 = vperm.xlu0 %511, %v507
        %v513 = vpop.permute.xlu0 %512
        %516 = vset.pattern.permute.xlu0 0
        %517 = vperm.xlu0 %516, %v508
        %v518 = vpop.permute.xlu0 %517
        %521 = vset.pattern.permute.xlu0 0
        %522 = vperm.xlu0 %521, %v509
        %v523 = vpop.permute.xlu0 %522
        %v525 = vadd.f32 %v501, %v513
        %v526 = vadd.f32 %v502, %v513
        %v527 = vadd.f32 %v503, %v518
        %v528 = vadd.f32 %v504, %v518
        %v529 = vadd.f32 %v505, %v523
        %v530 = vadd.f32 %v506, %v523
        %v531 = vmax.f32 %v525, 0.0
        %v532 = vmax.f32 %v526, 0.0
        %v533 = vmax.f32 %v527, 0.0
        %v534 = vmax.f32 %v528, 0.0
        %v535 = vmax.f32 %v529, 0.0
        %v536 = vmax.f32 %v530, 0.0
        %543 = vrot.lane.b32.xlu0 %v531, 17
        %v544 = vpop.permute.xlu0 %543
        %545 = vrot.lane.b32.xlu0 %v532, 17
        %v546 = vpop.permute.xlu0 %545
        %547 = vrot.lane.b32.xlu0 %v533, 17
        %v548 = vpop.permute.xlu0 %547
        %549 = vrot.lane.b32.xlu0 %v534, 17
        %v550 = vpop.permute.xlu0 %549
        %551 = vrot.lane.b32.xlu0 %v535, 17
        %v552 = vpop.permute.xlu0 %551
        %553 = vrot.lane.b32.xlu0 %v536, 17
        %v554 = vpop.permute.xlu0 %553
        %vm555 = vcmask 138240
        %v556 = vsel %vm555, %v544, %v546
        %v557 = vsel %vm555, %v548, %v550
        %v558 = vsel %vm555, %v552, %v554
        %v568 = vsel %vm555, 0.0, %v544
        %v569 = vsel %vm555, 0.0, %v548
        %v570 = vsel %vm555, 0.0, %v552
        %v571 = vsel %vm555, %v546, 0.0
        %v572 = vsel %vm555, %v550, 0.0
        %v573 = vsel %vm555, %v554, 0.0
        %v574 = vld [vmem:[%s7] sm:$0x3]
        %v575 = vld [vmem:[%s8] sm:$0x3]
        %v576 = vld [vmem:[%s3] sm:$0xff]
        %v577 = vld [vmem:[%s3 + $0x8] sm:$0xff]
        %v578 = vld [vmem:[%s3 + $0x10] sm:$0xff]
        %v580 = vlaneseq
        %v581 = vshrl.u32 %v580, 7
        %v582 = vsub.s32 0, %v581
        %v583 = vrot.slane %v574, %v582
        %v584 = vlaneseq
        %v585 = vshrl.u32 %v584, 7
        %v586 = vsub.s32 1, %v585
        %v587 = vrot.slane %v574, %v586
        %v590 = vmul.f32 %v568, %v583
        %v591 = vmul.f32 %v556, %v587
        %v592 = vmul.f32 %v569, %v583
        %v593 = vmul.f32 %v557, %v587
        %v594 = vmul.f32 %v570, %v583
        %v595 = vmul.f32 %v558, %v587
        %597 = vset.pattern.permute.xlu0 0
        %598 = vperm.xlu0 %597, %v576
        %v599 = vpop.permute.xlu0 %598
        %602 = vset.pattern.permute.xlu0 0
        %603 = vperm.xlu0 %602, %v577
        %v604 = vpop.permute.xlu0 %603
        %607 = vset.pattern.permute.xlu0 0
        %608 = vperm.xlu0 %607, %v578
        %v609 = vpop.permute.xlu0 %608
        %v611 = vmul.f32 %v590, %v599
        %v612 = vmul.f32 %v591, %v599
        %v613 = vmul.f32 %v592, %v604
        %v614 = vmul.f32 %v593, %v604
        %v615 = vmul.f32 %v594, %v609
        %v616 = vmul.f32 %v595, %v609
        %v617 = vadd.f32 %v611, 0.0
        %v618 = vadd.f32 %v612, 0.0
        %v619 = vadd.f32 %v613, 0.0
        %v620 = vadd.f32 %v614, 0.0
        %v621 = vadd.f32 %v615, 0.0
        %v622 = vadd.f32 %v616, 0.0
        %623 = vset.pattern.permute.xlu0 1
        %624 = vperm.xlu0 %623, %v576
        %v625 = vpop.permute.xlu0 %624
        %627 = vset.pattern.permute.xlu0 1
        %628 = vperm.xlu0 %627, %v577
        %v629 = vpop.permute.xlu0 %628
        %631 = vset.pattern.permute.xlu0 1
        %632 = vperm.xlu0 %631, %v578
        %v633 = vpop.permute.xlu0 %632
        %v635 = vmul.f32 %v568, %v625
        %v636 = vmul.f32 %v556, %v625
        %v637 = vmul.f32 %v571, %v625
        %v638 = vmul.f32 %v569, %v629
        %v639 = vmul.f32 %v557, %v629
        %v640 = vmul.f32 %v572, %v629
        %v641 = vmul.f32 %v570, %v633
        %v642 = vmul.f32 %v558, %v633
        %v643 = vmul.f32 %v573, %v633
        %653 = vrot.lane.b32.xlu0 %v635, 127
        %v654 = vpop.permute.xlu0 %653
        %655 = vrot.lane.b32.xlu0 %v636, 127
        %v656 = vpop.permute.xlu0 %655
        %657 = vrot.lane.b32.xlu0 %v637, 127
        %v658 = vpop.permute.xlu0 %657
        %659 = vrot.lane.b32.xlu0 %v638, 127
        %v660 = vpop.permute.xlu0 %659
        %661 = vrot.lane.b32.xlu0 %v639, 127
        %v662 = vpop.permute.xlu0 %661
        %663 = vrot.lane.b32.xlu0 %v640, 127
        %v664 = vpop.permute.xlu0 %663
        %665 = vrot.lane.b32.xlu0 %v641, 127
        %v666 = vpop.permute.xlu0 %665
        %667 = vrot.lane.b32.xlu0 %v642, 127
        %v668 = vpop.permute.xlu0 %667
        %669 = vrot.lane.b32.xlu0 %v643, 127
        %v670 = vpop.permute.xlu0 %669
        %vm671 = vcmask 1039360
        %v672 = vsel %vm671, %v654, %v656
        %v673 = vsel %vm671, %v656, %v658
        %v674 = vsel %vm671, %v660, %v662
        %v675 = vsel %vm671, %v662, %v664
        %v676 = vsel %vm671, %v666, %v668
        %v677 = vsel %vm671, %v668, %v670
        %v684 = vadd.f32 %v617, %v672
        %v685 = vadd.f32 %v618, %v673
        %v686 = vadd.f32 %v619, %v674
        %v687 = vadd.f32 %v620, %v675
        %v688 = vadd.f32 %v621, %v676
        %v689 = vadd.f32 %v622, %v677
        %v691 = vlaneseq
        %v692 = vshrl.u32 %v691, 7
        %v693 = vsub.s32 0, %v692
        %v694 = vrot.slane %v575, %v693
        %v695 = vlaneseq
        %v696 = vshrl.u32 %v695, 7
        %v697 = vsub.s32 1, %v696
        %v698 = vrot.slane %v575, %v697
        %699 = vrot.lane.b32.xlu0 %v694, 2
        %v700 = vpop.permute.xlu0 %699
        %701 = vrot.lane.b32.xlu0 %v698, 2
        %v702 = vpop.permute.xlu0 %701
        %vm703 = vcmask 15360
        %v704 = vsel %vm703, %v700, %v702
        %v708 = vmul.f32 %v568, %v700
        %v709 = vmul.f32 %v556, %v704
        %v710 = vmul.f32 %v571, %v702
        %v711 = vmul.f32 %v569, %v700
        %v712 = vmul.f32 %v557, %v704
        %v713 = vmul.f32 %v572, %v702
        %v714 = vmul.f32 %v570, %v700
        %v715 = vmul.f32 %v558, %v704
        %v716 = vmul.f32 %v573, %v702
        %717 = vset.pattern.permute.xlu0 2
        %718 = vperm.xlu0 %717, %v576
        %v719 = vpop.permute.xlu0 %718
        %721 = vset.pattern.permute.xlu0 2
        %722 = vperm.xlu0 %721, %v577
        %v723 = vpop.permute.xlu0 %722
        %725 = vset.pattern.permute.xlu0 2
        %726 = vperm.xlu0 %725, %v578
        %v727 = vpop.permute.xlu0 %726
        %v729 = vmul.f32 %v708, %v719
        %v730 = vmul.f32 %v709, %v719
        %v731 = vmul.f32 %v710, %v719
        %v732 = vmul.f32 %v711, %v723
        %v733 = vmul.f32 %v712, %v723
        %v734 = vmul.f32 %v713, %v723
        %v735 = vmul.f32 %v714, %v727
        %v736 = vmul.f32 %v715, %v727
        %v737 = vmul.f32 %v716, %v727
        %747 = vrot.lane.b32.xlu0 %v729, 126
        %v748 = vpop.permute.xlu0 %747
        %749 = vrot.lane.b32.xlu0 %v730, 126
        %v750 = vpop.permute.xlu0 %749
        %751 = vrot.lane.b32.xlu0 %v731, 126
        %v752 = vpop.permute.xlu0 %751
        %753 = vrot.lane.b32.xlu0 %v732, 126
        %v754 = vpop.permute.xlu0 %753
        %755 = vrot.lane.b32.xlu0 %v733, 126
        %v756 = vpop.permute.xlu0 %755
        %757 = vrot.lane.b32.xlu0 %v734, 126
        %v758 = vpop.permute.xlu0 %757
        %759 = vrot.lane.b32.xlu0 %v735, 126
        %v760 = vpop.permute.xlu0 %759
        %761 = vrot.lane.b32.xlu0 %v736, 126
        %v762 = vpop.permute.xlu0 %761
        %763 = vrot.lane.b32.xlu0 %v737, 126
        %v764 = vpop.permute.xlu0 %763
        %vm765 = vcmask 1031168
        %v766 = vsel %vm765, %v748, %v750
        %v767 = vsel %vm765, %v750, %v752
        %v768 = vsel %vm765, %v754, %v756
        %v769 = vsel %vm765, %v756, %v758
        %v770 = vsel %vm765, %v760, %v762
        %v771 = vsel %vm765, %v762, %v764
        %v778 = vadd.f32 %v684, %v766
        %v779 = vadd.f32 %v685, %v767
        %v780 = vadd.f32 %v686, %v768
        %v781 = vadd.f32 %v687, %v769
        %v782 = vadd.f32 %v688, %v770
        %v783 = vadd.f32 %v689, %v771
        %784 = vrot.lane.b32.xlu0 %v583, 16
        %v785 = vpop.permute.xlu0 %784
        %786 = vrot.lane.b32.xlu0 %v587, 16
        %v787 = vpop.permute.xlu0 %786
        %vm788 = vcmask 130048
        %v789 = vsel %vm788, %v785, %v787
        %v793 = vmul.f32 %v568, %v785
        %v794 = vmul.f32 %v556, %v789
        %v795 = vmul.f32 %v571, %v787
        %v796 = vmul.f32 %v569, %v785
        %v797 = vmul.f32 %v557, %v789
        %v798 = vmul.f32 %v572, %v787
        %v799 = vmul.f32 %v570, %v785
        %v800 = vmul.f32 %v558, %v789
        %v801 = vmul.f32 %v573, %v787
        %802 = vset.pattern.permute.xlu0 3
        %803 = vperm.xlu0 %802, %v576
        %v804 = vpop.permute.xlu0 %803
        %806 = vset.pattern.permute.xlu0 3
        %807 = vperm.xlu0 %806, %v577
        %v808 = vpop.permute.xlu0 %807
        %810 = vset.pattern.permute.xlu0 3
        %811 = vperm.xlu0 %810, %v578
        %v812 = vpop.permute.xlu0 %811
        %v814 = vmul.f32 %v793, %v804
        %v815 = vmul.f32 %v794, %v804
        %v816 = vmul.f32 %v795, %v804
        %v817 = vmul.f32 %v796, %v808
        %v818 = vmul.f32 %v797, %v808
        %v819 = vmul.f32 %v798, %v808
        %v820 = vmul.f32 %v799, %v812
        %v821 = vmul.f32 %v800, %v812
        %v822 = vmul.f32 %v801, %v812
        %832 = vrot.lane.b32.xlu0 %v814, 112
        %v833 = vpop.permute.xlu0 %832
        %834 = vrot.lane.b32.xlu0 %v815, 112
        %v835 = vpop.permute.xlu0 %834
        %836 = vrot.lane.b32.xlu0 %v816, 112
        %v837 = vpop.permute.xlu0 %836
        %838 = vrot.lane.b32.xlu0 %v817, 112
        %v839 = vpop.permute.xlu0 %838
        %840 = vrot.lane.b32.xlu0 %v818, 112
        %v841 = vpop.permute.xlu0 %840
        %842 = vrot.lane.b32.xlu0 %v819, 112
        %v843 = vpop.permute.xlu0 %842
        %844 = vrot.lane.b32.xlu0 %v820, 112
        %v845 = vpop.permute.xlu0 %844
        %846 = vrot.lane.b32.xlu0 %v821, 112
        %v847 = vpop.permute.xlu0 %846
        %848 = vrot.lane.b32.xlu0 %v822, 112
        %v849 = vpop.permute.xlu0 %848
        %vm850 = vcmask 916480
        %v851 = vsel %vm850, %v833, %v835
        %v852 = vsel %vm850, %v835, %v837
        %v853 = vsel %vm850, %v839, %v841
        %v854 = vsel %vm850, %v841, %v843
        %v855 = vsel %vm850, %v845, %v847
        %v856 = vsel %vm850, %v847, %v849
        %v863 = vadd.f32 %v778, %v851
        %v864 = vadd.f32 %v779, %v852
        %v865 = vadd.f32 %v780, %v853
        %v866 = vadd.f32 %v781, %v854
        %v867 = vadd.f32 %v782, %v855
        %v868 = vadd.f32 %v783, %v856
        %869 = vset.pattern.permute.xlu0 4
        %870 = vperm.xlu0 %869, %v576
        %v871 = vpop.permute.xlu0 %870
        %873 = vset.pattern.permute.xlu0 4
        %874 = vperm.xlu0 %873, %v577
        %v875 = vpop.permute.xlu0 %874
        %877 = vset.pattern.permute.xlu0 4
        %878 = vperm.xlu0 %877, %v578
        %v879 = vpop.permute.xlu0 %878
        %v881 = vmul.f32 %v568, %v871
        %v882 = vmul.f32 %v556, %v871
        %v883 = vmul.f32 %v571, %v871
        %v884 = vmul.f32 %v569, %v875
        %v885 = vmul.f32 %v557, %v875
        %v886 = vmul.f32 %v572, %v875
        %v887 = vmul.f32 %v570, %v879
        %v888 = vmul.f32 %v558, %v879
        %v889 = vmul.f32 %v573, %v879
        %899 = vrot.lane.b32.xlu0 %v881, 111
        %v900 = vpop.permute.xlu0 %899
        %901 = vrot.lane.b32.xlu0 %v882, 111
        %v902 = vpop.permute.xlu0 %901
        %903 = vrot.lane.b32.xlu0 %v883, 111
        %v904 = vpop.permute.xlu0 %903
        %905 = vrot.lane.b32.xlu0 %v884, 111
        %v906 = vpop.permute.xlu0 %905
        %907 = vrot.lane.b32.xlu0 %v885, 111
        %v908 = vpop.permute.xlu0 %907
        %909 = vrot.lane.b32.xlu0 %v886, 111
        %v910 = vpop.permute.xlu0 %909
        %911 = vrot.lane.b32.xlu0 %v887, 111
        %v912 = vpop.permute.xlu0 %911
        %913 = vrot.lane.b32.xlu0 %v888, 111
        %v914 = vpop.permute.xlu0 %913
        %915 = vrot.lane.b32.xlu0 %v889, 111
        %v916 = vpop.permute.xlu0 %915
        %vm917 = vcmask 908288
        %v918 = vsel %vm917, %v900, %v902
        %v919 = vsel %vm917, %v902, %v904
        %v920 = vsel %vm917, %v906, %v908
        %v921 = vsel %vm917, %v908, %v910
        %v922 = vsel %vm917, %v912, %v914
        %v923 = vsel %vm917, %v914, %v916
        %v930 = vadd.f32 %v863, %v918
        %v931 = vadd.f32 %v864, %v919
        %v932 = vadd.f32 %v865, %v920
        %v933 = vadd.f32 %v866, %v921
        %v934 = vadd.f32 %v867, %v922
        %v935 = vadd.f32 %v868, %v923
        %936 = vrot.lane.b32.xlu0 %v694, 18
        %v937 = vpop.permute.xlu0 %936
        %938 = vrot.lane.b32.xlu0 %v698, 18
        %v939 = vpop.permute.xlu0 %938
        %vm940 = vcmask 146432
        %v941 = vsel %vm940, %v937, %v939
        %v945 = vmul.f32 %v568, %v937
        %v946 = vmul.f32 %v556, %v941
        %v947 = vmul.f32 %v571, %v939
        %v948 = vmul.f32 %v569, %v937
        %v949 = vmul.f32 %v557, %v941
        %v950 = vmul.f32 %v572, %v939
        %v951 = vmul.f32 %v570, %v937
        %v952 = vmul.f32 %v558, %v941
        %v953 = vmul.f32 %v573, %v939
        %954 = vset.pattern.permute.xlu0 5
        %955 = vperm.xlu0 %954, %v576
        %v956 = vpop.permute.xlu0 %955
        %958 = vset.pattern.permute.xlu0 5
        %959 = vperm.xlu0 %958, %v577
        %v960 = vpop.permute.xlu0 %959
        %962 = vset.pattern.permute.xlu0 5
        %963 = vperm.xlu0 %962, %v578
        %v964 = vpop.permute.xlu0 %963
        %v966 = vmul.f32 %v945, %v956
        %v967 = vmul.f32 %v946, %v956
        %v968 = vmul.f32 %v947, %v956
        %v969 = vmul.f32 %v948, %v960
        %v970 = vmul.f32 %v949, %v960
        %v971 = vmul.f32 %v950, %v960
        %v972 = vmul.f32 %v951, %v964
        %v973 = vmul.f32 %v952, %v964
        %v974 = vmul.f32 %v953, %v964
        %984 = vrot.lane.b32.xlu0 %v966, 110
        %v985 = vpop.permute.xlu0 %984
        %986 = vrot.lane.b32.xlu0 %v967, 110
        %v987 = vpop.permute.xlu0 %986
        %988 = vrot.lane.b32.xlu0 %v968, 110
        %v989 = vpop.permute.xlu0 %988
        %990 = vrot.lane.b32.xlu0 %v969, 110
        %v991 = vpop.permute.xlu0 %990
        %992 = vrot.lane.b32.xlu0 %v970, 110
        %v993 = vpop.permute.xlu0 %992
        %994 = vrot.lane.b32.xlu0 %v971, 110
        %v995 = vpop.permute.xlu0 %994
        %996 = vrot.lane.b32.xlu0 %v972, 110
        %v997 = vpop.permute.xlu0 %996
        %998 = vrot.lane.b32.xlu0 %v973, 110
        %v999 = vpop.permute.xlu0 %998
        %1000 = vrot.lane.b32.xlu0 %v974, 110
        %v1001 = vpop.permute.xlu0 %1000
        %vm1002 = vcmask 900096
        %v1003 = vsel %vm1002, %v985, %v987
        %v1004 = vsel %vm1002, %v987, %v989
        %v1005 = vsel %vm1002, %v991, %v993
        %v1006 = vsel %vm1002, %v993, %v995
        %v1007 = vsel %vm1002, %v997, %v999
        %v1008 = vsel %vm1002, %v999, %v1001
        %v1015 = vadd.f32 %v930, %v1003
        %v1016 = vadd.f32 %v931, %v1004
        %v1017 = vadd.f32 %v932, %v1005
        %v1018 = vadd.f32 %v933, %v1006
        %v1019 = vadd.f32 %v934, %v1007
        %v1020 = vadd.f32 %v935, %v1008
        %1021 = vrot.lane.b32.xlu0 %v583, 32
        %v1022 = vpop.permute.xlu0 %1021
        %1023 = vrot.lane.b32.xlu0 %v587, 32
        %v1024 = vpop.permute.xlu0 %1023
        %vm1025 = vcmask 261120
        %v1026 = vsel %vm1025, %v1022, %v1024
        %v1030 = vmul.f32 %v568, %v1022
        %v1031 = vmul.f32 %v556, %v1026
        %v1032 = vmul.f32 %v571, %v1024
        %v1033 = vmul.f32 %v569, %v1022
        %v1034 = vmul.f32 %v557, %v1026
        %v1035 = vmul.f32 %v572, %v1024
        %v1036 = vmul.f32 %v570, %v1022
        %v1037 = vmul.f32 %v558, %v1026
        %v1038 = vmul.f32 %v573, %v1024
        %1039 = vset.pattern.permute.xlu0 6
        %1040 = vperm.xlu0 %1039, %v576
        %v1041 = vpop.permute.xlu0 %1040
        %1043 = vset.pattern.permute.xlu0 6
        %1044 = vperm.xlu0 %1043, %v577
        %v1045 = vpop.permute.xlu0 %1044
        %1047 = vset.pattern.permute.xlu0 6
        %1048 = vperm.xlu0 %1047, %v578
        %v1049 = vpop.permute.xlu0 %1048
        %v1051 = vmul.f32 %v1030, %v1041
        %v1052 = vmul.f32 %v1031, %v1041
        %v1053 = vmul.f32 %v1032, %v1041
        %v1054 = vmul.f32 %v1033, %v1045
        %v1055 = vmul.f32 %v1034, %v1045
        %v1056 = vmul.f32 %v1035, %v1045
        %v1057 = vmul.f32 %v1036, %v1049
        %v1058 = vmul.f32 %v1037, %v1049
        %v1059 = vmul.f32 %v1038, %v1049
        %1069 = vrot.lane.b32.xlu0 %v1051, 96
        %v1070 = vpop.permute.xlu0 %1069
        %1071 = vrot.lane.b32.xlu0 %v1052, 96
        %v1072 = vpop.permute.xlu0 %1071
        %1073 = vrot.lane.b32.xlu0 %v1053, 96
        %v1074 = vpop.permute.xlu0 %1073
        %1075 = vrot.lane.b32.xlu0 %v1054, 96
        %v1076 = vpop.permute.xlu0 %1075
        %1077 = vrot.lane.b32.xlu0 %v1055, 96
        %v1078 = vpop.permute.xlu0 %1077
        %1079 = vrot.lane.b32.xlu0 %v1056, 96
        %v1080 = vpop.permute.xlu0 %1079
        %1081 = vrot.lane.b32.xlu0 %v1057, 96
        %v1082 = vpop.permute.xlu0 %1081
        %1083 = vrot.lane.b32.xlu0 %v1058, 96
        %v1084 = vpop.permute.xlu0 %1083
        %1085 = vrot.lane.b32.xlu0 %v1059, 96
        %v1086 = vpop.permute.xlu0 %1085
        %vm1087 = vcmask 785408
        %v1088 = vsel %vm1087, %v1070, %v1072
        %v1089 = vsel %vm1087, %v1072, %v1074
        %v1090 = vsel %vm1087, %v1076, %v1078
        %v1091 = vsel %vm1087, %v1078, %v1080
        %v1092 = vsel %vm1087, %v1082, %v1084
        %v1093 = vsel %vm1087, %v1084, %v1086
        %v1100 = vadd.f32 %v1015, %v1088
        %v1101 = vadd.f32 %v1016, %v1089
        %v1102 = vadd.f32 %v1017, %v1090
        %v1103 = vadd.f32 %v1018, %v1091
        %v1104 = vadd.f32 %v1019, %v1092
        %v1105 = vadd.f32 %v1020, %v1093
        %1106 = vset.pattern.permute.xlu0 7
        %1107 = vperm.xlu0 %1106, %v576
        %v1108 = vpop.permute.xlu0 %1107
        %1110 = vset.pattern.permute.xlu0 7
        %1111 = vperm.xlu0 %1110, %v577
        %v1112 = vpop.permute.xlu0 %1111
        %1114 = vset.pattern.permute.xlu0 7
        %1115 = vperm.xlu0 %1114, %v578
        %v1116 = vpop.permute.xlu0 %1115
        %v1118 = vmul.f32 %v568, %v1108
        %v1119 = vmul.f32 %v556, %v1108
        %v1120 = vmul.f32 %v571, %v1108
        %v1121 = vmul.f32 %v569, %v1112
        %v1122 = vmul.f32 %v557, %v1112
        %v1123 = vmul.f32 %v572, %v1112
        %v1124 = vmul.f32 %v570, %v1116
        %v1125 = vmul.f32 %v558, %v1116
        %v1126 = vmul.f32 %v573, %v1116
        %1136 = vrot.lane.b32.xlu0 %v1118, 95
        %v1137 = vpop.permute.xlu0 %1136
        %1138 = vrot.lane.b32.xlu0 %v1119, 95
        %v1139 = vpop.permute.xlu0 %1138
        %1140 = vrot.lane.b32.xlu0 %v1120, 95
        %v1141 = vpop.permute.xlu0 %1140
        %1142 = vrot.lane.b32.xlu0 %v1121, 95
        %v1143 = vpop.permute.xlu0 %1142
        %1144 = vrot.lane.b32.xlu0 %v1122, 95
        %v1145 = vpop.permute.xlu0 %1144
        %1146 = vrot.lane.b32.xlu0 %v1123, 95
        %v1147 = vpop.permute.xlu0 %1146
        %1148 = vrot.lane.b32.xlu0 %v1124, 95
        %v1149 = vpop.permute.xlu0 %1148
        %1150 = vrot.lane.b32.xlu0 %v1125, 95
        %v1151 = vpop.permute.xlu0 %1150
        %1152 = vrot.lane.b32.xlu0 %v1126, 95
        %v1153 = vpop.permute.xlu0 %1152
        %vm1154 = vcmask 777216
        %v1155 = vsel %vm1154, %v1137, %v1139
        %v1156 = vsel %vm1154, %v1139, %v1141
        %v1157 = vsel %vm1154, %v1143, %v1145
        %v1158 = vsel %vm1154, %v1145, %v1147
        %v1159 = vsel %vm1154, %v1149, %v1151
        %v1160 = vsel %vm1154, %v1151, %v1153
        %v1167 = vadd.f32 %v1100, %v1155
        %v1168 = vadd.f32 %v1101, %v1156
        %v1169 = vadd.f32 %v1102, %v1157
        %v1170 = vadd.f32 %v1103, %v1158
        %v1171 = vadd.f32 %v1104, %v1159
        %v1172 = vadd.f32 %v1105, %v1160
        %1173 = vrot.lane.b32.xlu0 %v694, 34
        %v1174 = vpop.permute.xlu0 %1173
        %1175 = vrot.lane.b32.xlu0 %v698, 34
        %v1176 = vpop.permute.xlu0 %1175
        %vm1177 = vcmask 277504
        %v1178 = vsel %vm1177, %v1174, %v1176
        %v1182 = vmul.f32 %v568, %v1174
        %v1183 = vmul.f32 %v556, %v1178
        %v1184 = vmul.f32 %v571, %v1176
        %v1185 = vmul.f32 %v569, %v1174
        %v1186 = vmul.f32 %v557, %v1178
        %v1187 = vmul.f32 %v572, %v1176
        %v1188 = vmul.f32 %v570, %v1174
        %v1189 = vmul.f32 %v558, %v1178
        %v1190 = vmul.f32 %v573, %v1176
        %1191 = vset.pattern.permute.xlu0 8
        %1192 = vperm.xlu0 %1191, %v576
        %v1193 = vpop.permute.xlu0 %1192
        %1195 = vset.pattern.permute.xlu0 8
        %1196 = vperm.xlu0 %1195, %v577
        %v1197 = vpop.permute.xlu0 %1196
        %1199 = vset.pattern.permute.xlu0 8
        %1200 = vperm.xlu0 %1199, %v578
        %v1201 = vpop.permute.xlu0 %1200
        %v1203 = vmul.f32 %v1182, %v1193
        %v1204 = vmul.f32 %v1183, %v1193
        %v1205 = vmul.f32 %v1184, %v1193
        %v1206 = vmul.f32 %v1185, %v1197
        %v1207 = vmul.f32 %v1186, %v1197
        %v1208 = vmul.f32 %v1187, %v1197
        %v1209 = vmul.f32 %v1188, %v1201
        %v1210 = vmul.f32 %v1189, %v1201
        %v1211 = vmul.f32 %v1190, %v1201
        %1221 = vrot.lane.b32.xlu0 %v1203, 94
        %v1222 = vpop.permute.xlu0 %1221
        %1223 = vrot.lane.b32.xlu0 %v1204, 94
        %v1224 = vpop.permute.xlu0 %1223
        %1225 = vrot.lane.b32.xlu0 %v1205, 94
        %v1226 = vpop.permute.xlu0 %1225
        %1227 = vrot.lane.b32.xlu0 %v1206, 94
        %v1228 = vpop.permute.xlu0 %1227
        %1229 = vrot.lane.b32.xlu0 %v1207, 94
        %v1230 = vpop.permute.xlu0 %1229
        %1231 = vrot.lane.b32.xlu0 %v1208, 94
        %v1232 = vpop.permute.xlu0 %1231
        %1233 = vrot.lane.b32.xlu0 %v1209, 94
        %v1234 = vpop.permute.xlu0 %1233
        %1235 = vrot.lane.b32.xlu0 %v1210, 94
        %v1236 = vpop.permute.xlu0 %1235
        %1237 = vrot.lane.b32.xlu0 %v1211, 94
        %v1238 = vpop.permute.xlu0 %1237
        %vm1239 = vcmask 769024
        %v1240 = vsel %vm1239, %v1222, %v1224
        %v1241 = vsel %vm1239, %v1224, %v1226
        %v1242 = vsel %vm1239, %v1228, %v1230
        %v1243 = vsel %vm1239, %v1230, %v1232
        %v1244 = vsel %vm1239, %v1234, %v1236
        %v1245 = vsel %vm1239, %v1236, %v1238
        %v1252 = vadd.f32 %v1167, %v1240
        %v1253 = vadd.f32 %v1168, %v1241
        %v1254 = vadd.f32 %v1169, %v1242
        %v1255 = vadd.f32 %v1170, %v1243
        %v1256 = vadd.f32 %v1171, %v1244
        %v1257 = vadd.f32 %v1172, %v1245
        %v1258 = vld [vmem:[%s4] sm:$0xff]
        %v1259 = vld [vmem:[%s4 + $0x8] sm:$0xff]
        %v1260 = vld [vmem:[%s4 + $0x10] sm:$0xff]
        %1262 = vset.pattern.permute.xlu0 0
        %1263 = vperm.xlu0 %1262, %v1258
        %v1264 = vpop.permute.xlu0 %1263
        %1267 = vset.pattern.permute.xlu0 0
        %1268 = vperm.xlu0 %1267, %v1259
        %v1269 = vpop.permute.xlu0 %1268
        %1272 = vset.pattern.permute.xlu0 0
        %1273 = vperm.xlu0 %1272, %v1260
        %v1274 = vpop.permute.xlu0 %1273
        %v1276 = vadd.f32 %v1252, %v1264
        %v1277 = vadd.f32 %v1253, %v1264
        %v1278 = vadd.f32 %v1254, %v1269
        %v1279 = vadd.f32 %v1255, %v1269
        %v1280 = vadd.f32 %v1256, %v1274
        %v1281 = vadd.f32 %v1257, %v1274
        %v1282 = vmax.f32 %v1276, 0.0
        %v1283 = vmax.f32 %v1277, 0.0
        %v1284 = vmax.f32 %v1278, 0.0
        %v1285 = vmax.f32 %v1279, 0.0
        %v1286 = vmax.f32 %v1280, 0.0
        %v1287 = vmax.f32 %v1281, 0.0
        %v1288 = vld [vmem:[%s5] sm:$0xf]
        %v1289 = vld [vmem:[%s6] sm:$0xf]
        %1291 = vset.pattern.permute.xlu0 0
        %1292 = vperm.xlu0 %1291, %v1289
        %v1293 = vpop.permute.xlu0 %1292
        %vm1295 = vcmask 195584
        %v1297 = vsel %vm1295, %v1288, 0
        %1299 = vmatprep.subr.mxu0 %v1283
        %1300 = vmatpush1.msra.mxu0 %v1282
        %1301 = vmatprep.subr.mxu0 %v1285
        %1302 = vmatpush1.msra.mxu0 %v1284
        %1303 = vmatprep.subr.mxu0 %v1287
        %1304 = vmatpush1.msra.mxu0 %v1286
        %1305 = vmatprep.subr.mxu0 0.0
        %1306 = vmatpush1.msra.mxu0 0.0
        %1307 = vmatprep.subr.mxu0 0.0
        %1308 = vmatpush1.msra.mxu0 0.0
        %1309 = vmatprep.subr.mxu0 0.0
        %1310 = vmatpush1.msra.mxu0 0.0
        %1311 = vmatprep.subr.mxu0 0.0
        %1312 = vmatpush1.msra.mxu0 0.0
        %1313 = vmatprep.subr.mxu0 0.0
        %1314 = vmatpush1.msra.mxu0 0.0
        %1315 = vmatprep.subr.mxu0 0.0
        %1316 = vmatpush1.msra.mxu0 0.0
        %1317 = vmatprep.subr.mxu0 0.0
        %1318 = vmatpush1.msra.mxu0 0.0
        %1319 = vmatprep.subr.mxu0 0.0
        %1320 = vmatpush1.msra.mxu0 0.0
        %1321 = vmatprep.subr.mxu0 0.0
        %1322 = vmatpush1.msra.mxu0 0.0
        %1323 = vmatprep.subr.mxu0 0.0
        %1324 = vmatpush1.msra.mxu0 0.0
        %1325 = vmatprep.subr.mxu0 0.0
        %1326 = vmatpush1.msra.mxu0 0.0
        %1327 = vmatprep.subr.mxu0 0.0
        %1328 = vmatpush1.msra.mxu0 0.0
        %1329 = vmatprep.subr.mxu0 0.0
        %1330 = vmatpush1.msra.mxu0 0.0
        %1331 = vmatprep.subr.mxu0 0.0
        %1332 = vmatpush1.msra.mxu0 0.0
        %1333 = vmatprep.subr.mxu0 0.0
        %1334 = vmatpush1.msra.mxu0 0.0
        %1335 = vmatprep.subr.mxu0 0.0
        %1336 = vmatpush1.msra.mxu0 0.0
        %1337 = vmatprep.subr.mxu0 0.0
        %1338 = vmatpush1.msra.mxu0 0.0
        %1339 = vmatprep.subr.mxu0 0.0
        %1340 = vmatpush1.msra.mxu0 0.0
        %1341 = vmatprep.subr.mxu0 0.0
        %1342 = vmatpush1.msra.mxu0 0.0
        %1343 = vmatprep.subr.mxu0 0.0
        %1344 = vmatpush1.msra.mxu0 0.0
        %1345 = vmatprep.subr.mxu0 0.0
        %1346 = vmatpush1.msra.mxu0 0.0
        %1347 = vmatprep.subr.mxu0 0.0
        %1348 = vmatpush1.msra.mxu0 0.0
        %1349 = vmatprep.subr.mxu0 0.0
        %1350 = vmatpush1.msra.mxu0 0.0
        %1351 = vmatprep.subr.mxu0 0.0
        %1352 = vmatpush1.msra.mxu0 0.0
        %1353 = vmatprep.subr.mxu0 0.0
        %1354 = vmatpush1.msra.mxu0 0.0
        %1355 = vmatprep.subr.mxu0 0.0
        %1356 = vmatpush1.msra.mxu0 0.0
        %1357 = vmatprep.subr.mxu0 0.0
        %1358 = vmatpush1.msra.mxu0 0.0
        %1359 = vmatprep.subr.mxu0 0.0
        %1360 = vmatpush1.msra.mxu0 0.0
        %1361 = vmatprep.subr.mxu0 0.0
        %1362 = vmatpush1.msra.mxu0 0.0
        %1363 = vmatprep.mubr.f32.mxu0 0.0
        %1364 = vmatmul.mubr.f32.gmra.mrb[0].mxu0 %v1297
        %v1365 = vpop.f32.mrb[0].mxu0
        %v1366 = vadd.f32 %v1293, %v1365
        %v1367 = vpop.f32.mrb[0].mxu0
        %v1368 = vadd.f32 %v1293, %v1367
        %1369 = vdwg.mxu0
        %v1370 = vcombine.high %v331, %v331
        %v1372 = vadd.f32 %v1366, %v331
        %v1373 = vadd.f32 %v1368, %v1370
        %v1376 = vcombine.low %v1372, %v1373
        %1378 = vst [vmem:[%s325] sm:$0xff] %v1376
        %s1379 = sand.u32 %s225, 1
        %s1380 = scalar_lea.sflag [#allocation3], %s1379
        %s1381 = sand.u32 %s225, 1
        %s1382 = smul.addr %s1381, 8
        %s1383 = scalar_lea.vmem [#allocation2], %s1382
        // Predicated region
        $region57: #{tpu_custom_call.1} parent=55 // pred_check
          %p1384 = pneg %p235
        $region58: #{tpu_custom_call.1} parent=55 // pred_check_branch
          %1386 = sbr.rel (%p1384) target = $region60
        $region59: #{tpu_custom_call.1} parent=55 // pred_region
          %s1388 = ssub.s32 128, 128
          %1389 = vsyncadd %s1380, %s1388
          %s1390 = smul.addr %s23, 2
          %s1391 = smul.addr %s1390, 64
          %s1392 = scalar_lea.hbm %s9, %s1391
          %s1394 = sshll.u32 %s1383, 4
          %s1395 = int_to_ptr.vmem [resolvable:$true] %s1394
          %1397 = dma.vmem_to_hbm [thread:$0]  %s1395, 128, %s1392, %s1380
        $region60: #{tpu_custom_call.1} parent=55 // pred_fallthru
          _
      $region56: #{tpu_custom_call.1} parent=5 // pred_fallthru
        _
      %p1398 = scmp.le.s32.totalorder 2, %s18
      // Predicated region
      $region61: #{tpu_custom_call.1} parent=5 // pred_check
        %p1399 = pneg %p1398
      $region62: #{tpu_custom_call.1} parent=5 // pred_check_branch
        %1401 = sbr.rel (%p1399) target = $region64
      $region63: #{tpu_custom_call.1} parent=5 // pred_region
        %s1402 = ssub.s32 %s18, 2
        // Predicated region
        $region65: #{tpu_custom_call.1} parent=63 // pred_check
          %p1403 = pneg %p241
        $region66: #{tpu_custom_call.1} parent=63 // pred_check_branch
          %1405 = sbr.rel (%p1403) target = $region68
        $region67: #{tpu_custom_call.1} parent=63 // pred_region
          %s1406 = sand.u32 %s226, 1
          %s1407 = scalar_lea.sflag [#allocation3], %s1406
          %s1408 = sand.u32 %s226, 1
          %s1409 = smul.addr %s1408, 8
          %s1410 = scalar_lea.vmem [#allocation2], %s1409
          %1411 = dma.done %s1407, 128
        $region68: #{tpu_custom_call.1} parent=63 // pred_fallthru
          _
      $region64: #{tpu_custom_call.1} parent=5 // pred_fallthru
        _
    $region6: #{tpu_custom_call.1} parent=1 // loop_footer
      %s22 = sadd.s32 1, %s18
    $region7: #{tpu_custom_call.1} parent=1 // loop_footer_branch
      %17 = sbr.rel target = $region3
    $region8: #{tpu_custom_call.1} parent=1 // loop_exit
      _
    %1412 = vsyncpa [#allocation3], 1
    %s1413 = scalar_lea.sflag [#allocation3], 1
    %1414 = vsyncpa %s1413, 1

</llo_original>
